<compile_context>
chip_gen: v5e
topology: v5e:2x2
jax: 0.10.0
libtpu: 0.0.40
codegen_flags: <defaults>
</compile_context>

<pallas_src>
import functools

import jax
import jax.numpy as jnp
from jax import lax
from jax.experimental import pallas as pl
from jax.experimental.pallas import tpu as pltpu


def _round_up(x, m):
    return (x + m - 1) // m * m


def _choose_tile(size, candidates, max_waste=0.10):
    """Largest candidate that divides `size`; else largest with acceptable pad waste."""
    for t in candidates:
        if size >= t and size % t == 0:
            return t
    for t in candidates:
        if size >= t:
            padded = _round_up(size, t)
            if (padded - size) / padded <= max_waste:
                return t
    return min(candidates)


def _vmem_budget():
    """Per-generation VMEM planning numbers (v7x has only 64 MiB physical VMEM)."""
    try:
        cap = int(pltpu.get_tpu_info().vmem_capacity_bytes)
    except Exception:  # conservative fallback: assume the smallest (v7x-sized) VMEM
        cap = 64 * 1024 * 1024
    vmem_limit = min(int(cap * 0.75), 100 * 1024 * 1024)   # raise v5e's 16 MiB default
    tile_budget = int(vmem_limit * 0.65)                    # leave pipelining headroom
    return vmem_limit, tile_budget


def quant_jax(n_levels, x, x_range=None):
    # TODO(synk): QuantFunction source is not provided; assuming the standard symmetric
    # N-level quantization round(x / r * N) / N * r with r falling back to abs-max(x)
    # when the provided range is None / zero (matches the zeros(1) buffer init).  No
    # clamping is applied; confirm against the PyTorch QuantFunction if it clips.
    if x_range is None:
        r = jnp.max(jnp.abs(x))
    else:
        r = jnp.asarray(x_range, jnp.float32).reshape(())
        r = jnp.where(r > 0, r, jnp.max(jnp.abs(x)))
    safe = jnp.where(r > 0, r, 1.0)
    q = jnp.round(x / safe * n_levels) / n_levels * safe
    return jnp.where(r > 0, q, x)


# ---------------- Pallas kernels ----------------

def _conv_mm_fullk_kernel(a_ref, b_ref, bias_ref, *out_refs, scale, n_levels,
                          input_range, m_real, tm, m_ragged, emit_absmax):
    """Whole-K-resident bf16 matmul (one jnp.dot per (i, j) tile) + fused epilogue."""
    if emit_absmax:
        y_ref, mx_ref = out_refs
    else:
        (y_ref,) = out_refs

    y = jnp.dot(a_ref[...], b_ref[...], preferred_element_type=jnp.float32)
    y = y * scale + bias_ref[...]
    if emit_absmax:
        if m_ragged:
            # zero padded M rows (which would otherwise carry the bias) for exact abs-max
            rows = lax.broadcasted_iota(jnp.int32, y.shape, 0) + pl.program_id(0) * tm
            y = jnp.where(rows < m_real, y, 0.0)
        mx_ref[...] = jnp.broadcast_to(jnp.max(jnp.abs(y)), mx_ref.shape)
    if input_range > 0.0:
        inv = float(n_levels) / float(input_range)
        back = float(input_range) / float(n_levels)
        y = jnp.round(y * inv) * back
    y_ref[...] = y.astype(y_ref.dtype)


def _conv_mm_ktile_kernel(a_ref, b_ref, bias_ref, *refs, scale, n_levels,
                          input_range, m_real, tm, m_ragged, emit_absmax):
    """K-tiled bf16 matmul with f32 VMEM accumulator (fallback for very large K)."""
    if emit_absmax:
        y_ref, mx_ref, acc_ref = refs
    else:
        y_ref, acc_ref = refs

    kk = pl.program_id(2)

    @pl.when(kk == 0)
    def _():
        acc_ref[...] = jnp.zeros_like(acc_ref)

    acc_ref[...] += jnp.dot(a_ref[...], b_ref[...], preferred_element_type=jnp.float32)

    @pl.when(kk == pl.num_programs(2) - 1)
    def _():
        y = acc_ref[...] * scale + bias_ref[...]
        if emit_absmax:
            if m_ragged:
                rows = lax.broadcasted_iota(jnp.int32, y.shape, 0) + pl.program_id(0) * tm
                y = jnp.where(rows < m_real, y, 0.0)
            mx_ref[...] = jnp.broadcast_to(jnp.max(jnp.abs(y)), mx_ref.shape)
        if input_range > 0.0:
            inv = float(n_levels) / float(input_range)
            back = float(input_range) / float(n_levels)
            y = jnp.round(y * inv) * back
        y_ref[...] = y.astype(y_ref.dtype)


def _quant_kernel(r_ref, y_ref, o_ref, *, n_levels):
    """Elementwise N-level symmetric quantization; scalar range comes from SMEM."""
    r = r_ref[0]
    safe = jnp.where(r > 0.0, r, 1.0)
    inv = n_levels / safe      # scalar divide, hoisted once per tile
    back = safe / n_levels
    yv = y_ref[...].astype(jnp.float32)
    q = jnp.round(yv * inv) * back
    o_ref[...] = jnp.where(r > 0.0, q, yv)


# ---------------- glue (plain JAX) ----------------

def _im2col_nhwc(x, kh, kw, stride, padding, dilation, oh, ow, k_pad_to):
    """im2col in channel-last layout, bf16.  K ordering = (kh, kw, cin).

    The K padding (to `k_pad_to`) is folded into the single concatenate so the padded
    (M, K) matrix is materialized exactly once in HBM (no separate jnp.pad pass).
    """
    n, c, h, w = x.shape
    x_nhwc = jnp.transpose(x, (0, 2, 3, 1)).astype(jnp.bfloat16)
    xp = jnp.pad(x_nhwc, ((0, 0), (padding, padding), (padding, padding), (0, 0)))
    cols = []
    for ih in range(kh):
        for iw in range(kw):
            h0 = ih * dilation
            w0 = iw * dilation
            cols.append(xp[:, h0:h0 + stride * oh:stride,
                           w0:w0 + stride * ow:stride, :])
    extra = k_pad_to - kh * kw * c
    if extra:
        cols.append(jnp.zeros((n, oh, ow, extra), jnp.bfloat16))
    return jnp.concatenate(cols, axis=-1).reshape(n * oh * ow, k_pad_to)


def qnconv2d_forward(x, weight, bias, *, n_levels, stride=1, padding=0, dilation=1,
                     groups=1, scale=1.0, input_range=0.0, noise=None):
    assert groups == 1  # TODO(synk): grouped conv not implemented in the Pallas path
    # TODO(synk): training-mode EMA update of the `input_range` buffer is a stateful
    # side effect; eval-only forward here (buffer starts at 0, so values match).
    nb, cin, h, w = x.shape
    cout, cin_w, kh, kw = weight.shape
    assert cin_w == cin

    # weight / bias quantization (tiny tensors — plain JAX)
    w_q = quant_jax(n_levels, weight)
    if noise is not None:
        w_q = w_q + noise
    b_q = quant_jax(n_levels, bias) if bias is not None else jnp.zeros((cout,), jnp.float32)

    oh = (h + 2 * padding - dilation * (kh - 1) - 1) // stride + 1
    ow = (w + 2 * padding - dilation * (kw - 1) - 1) // stride + 1
    m = nb * oh * ow
    k = kh * kw * cin

    input_range = float(input_range)
    fuse_quant = input_range > 0.0
    emit_absmax = not fuse_quant
    # bf16 intermediate in the non-fused path halves the write + re-read of (M, N);
    # the fused path writes the final f32 result directly.
    y_dtype = jnp.float32 if fuse_quant else jnp.bfloat16
    y_bytes = 4 if fuse_quant else 2

    vmem_limit, tile_budget = _vmem_budget()

    # ---- tile selection: large divisor-friendly tiles, bounded by the VMEM budget ----
    tm = _choose_tile(m, (1024, 512, 256, 128))
    mp = _round_up(m, tm)
    np_ = _round_up(cout, 128)
    tn = _choose_tile(np_, (512, 256, 128))
    # v7x megacore: keep at least two (i, j) tiles so both TensorCores get work
    while (mp // tm) * (np_ // tn) < 2 and tm > 128:
        tm //= 2
        mp = _round_up(m, tm)

    kp128 = _round_up(k, 128)

    def _fullk_bytes(tm_, tn_):
        return (2 * tm_ * kp128 * 2          # A tile, double-buffered, bf16
                + 2 * kp128 * tn_ * 2        # B (whole K), double-buffered, bf16
                + 2 * tm_ * tn_ * y_bytes    # output tile, double-buffered
                + tm_ * tn_ * 4              # f32 dot result / epilogue temp
                + (2 * 8 * 128 * 4 if emit_absmax else 0)
                + 2 * tn_ * 4)               # bias row

    while _fullk_bytes(tm, tn) > tile_budget and tm > 128:
        tm //= 2
        mp = _round_up(m, tm)
    whole_k = _fullk_bytes(tm, tn) <= tile_budget

    bmat = w_q.transpose(2, 3, 1, 0).reshape(k, cout).astype(jnp.bfloat16)
    bias_pad = jnp.pad(b_q.astype(jnp.float32), (0, np_ - cout)).reshape(1, np_)

    common = dict(scale=float(scale), n_levels=float(n_levels), input_range=input_range,
                  m_real=m, tm=tm, m_ragged=(mp != m), emit_absmax=emit_absmax)

    if whole_k:
        kp = kp128
        a = _im2col_nhwc(x, kh, kw, stride, padding, dilation, oh, ow, kp)  # (m, kp) bf16
        a_pad = jnp.pad(a, ((0, mp - m), (0, 0))) if mp != m else a
        b_pad = jnp.pad(bmat, ((0, kp - k), (0, np_ - cout)))
        m_tiles, n_tiles = mp // tm, np_ // tn
        grid = (m_tiles, n_tiles)
        in_specs = [pl.BlockSpec((tm, kp), lambda i, j: (i, 0)),
                    pl.BlockSpec((kp, tn), lambda i, j: (0, j)),
                    pl.BlockSpec((1, tn), lambda i, j: (0, j))]
        y_spec = pl.BlockSpec((tm, tn), lambda i, j: (i, j))
        mx_spec = pl.BlockSpec((8, 128), lambda i, j: (i, j))
        kernel = functools.partial(_conv_mm_fullk_kernel, **common)
        scratch = []
        semantics = ("parallel", "parallel")
    else:
        tk = _choose_tile(k, (2048, 1024, 512, 256, 128))

        def _ktile_bytes(tm_, tn_, tk_):
            return (2 * tm_ * tk_ * 2 + 2 * tk_ * tn_ * 2
                    + 2 * tm_ * tn_ * y_bytes + 2 * tm_ * tn_ * 4
                    + (2 * 8 * 128 * 4 if emit_absmax else 0) + 2 * tn_ * 4)

        while _ktile_bytes(tm, tn, tk) > tile_budget and tk > 128:
            tk //= 2
        kp = _round_up(k, tk)
        a = _im2col_nhwc(x, kh, kw, stride, padding, dilation, oh, ow, kp)  # (m, kp) bf16
        a_pad = jnp.pad(a, ((0, mp - m), (0, 0))) if mp != m else a
        b_pad = jnp.pad(bmat, ((0, kp - k), (0, np_ - cout)))
        m_tiles, n_tiles = mp // tm, np_ // tn
        grid = (m_tiles, n_tiles, kp // tk)
        in_specs = [pl.BlockSpec((tm, tk), lambda i, j, kk: (i, kk)),
                    pl.BlockSpec((tk, tn), lambda i, j, kk: (kk, j)),
                    pl.BlockSpec((1, tn), lambda i, j, kk: (0, j))]
        y_spec = pl.BlockSpec((tm, tn), lambda i, j, kk: (i, j))
        mx_spec = pl.BlockSpec((8, 128), lambda i, j, kk: (i, j))
        kernel = functools.partial(_conv_mm_ktile_kernel, **common)
        scratch = [pltpu.VMEM((tm, tn), jnp.float32)]
        semantics = ("parallel", "parallel", "arbitrary")

    cost = pl.CostEstimate(
        flops=2 * mp * np_ * kp, transcendentals=0,
        bytes_accessed=int(a_pad.size * 2 + b_pad.size * 2 + bias_pad.size * 4
                           + mp * np_ * y_bytes
                           + (m_tiles * 8 * n_tiles * 128 * 4 if emit_absmax else 0)))

    if emit_absmax:
        out_shape = [jax.ShapeDtypeStruct((mp, np_), y_dtype),
                     jax.ShapeDtypeStruct((m_tiles * 8, n_tiles * 128), jnp.float32)]
        out_specs = [y_spec, mx_spec]
    else:
        out_shape = jax.ShapeDtypeStruct((mp, np_), y_dtype)
        out_specs = y_spec

    result = pl.pallas_call(
        kernel, grid=grid, in_specs=in_specs, out_specs=out_specs,
        out_shape=out_shape, scratch_shapes=scratch,
        compiler_params=pltpu.CompilerParams(dimension_semantics=semantics,
                                             vmem_limit_bytes=vmem_limit),
        cost_estimate=cost,
    )(a_pad, b_pad, bias_pad)

    if fuse_quant:
        # output quantization already fused into the matmul epilogue (no second pass)
        y_q = result
    else:
        y_pad, mx = result
        r = jnp.max(mx).reshape(1)
        tq = _choose_tile(mp, (1024, 512, 256, 128))
        tn2 = _choose_tile(np_, (512, 256, 128))
        # bf16 in + f32 out, double-buffered: keep well under v5e's scoped-VMEM default
        while 12 * tq * tn2 > (6 << 20) and tq > 128:
            tq //= 2
        while 12 * tq * tn2 > (6 << 20) and tn2 > 128:
            tn2 //= 2
        y_q = pl.pallas_call(
            functools.partial(_quant_kernel, n_levels=float(n_levels)),
            grid=(mp // tq, np_ // tn2),
            in_specs=[pl.BlockSpec(memory_space=pltpu.MemorySpace.SMEM),
                      pl.BlockSpec((tq, tn2), lambda i, j: (i, j))],
            out_specs=pl.BlockSpec((tq, tn2), lambda i, j: (i, j)),
            out_shape=jax.ShapeDtypeStruct((mp, np_), jnp.float32),
            compiler_params=pltpu.CompilerParams(
                dimension_semantics=("parallel", "parallel"),
                vmem_limit_bytes=vmem_limit),
            cost_estimate=pl.CostEstimate(
                flops=3 * mp * np_, transcendentals=0,
                bytes_accessed=int(mp * np_ * 2 + mp * np_ * 4 + 4)),
        )(r, y_pad)

    # TODO(synk): the final NCHW transpose is one extra full pass over the output; kept
    # for drop-in parity with the PyTorch module (callers accepting NHWC could skip it).
    out = y_q[:m, :cout].reshape(nb, oh, ow, cout).transpose(0, 3, 1, 2)
    return out


if __name__ == "__main__":
    key = jax.random.PRNGKey(0)
    k_x, k_w, k_b = jax.random.split(key, 3)

    N_levels = 32
    nb, cin, hh, ww = 2, 4, 16, 16
    cout, kh, kw = 8, 3, 3
    stride, padding, dilation, groups = 1, 1, 1, 1
    scale = 1.0

    x = jax.random.normal(k_x, (nb, cin, hh, ww), jnp.float32)
    weight = jax.random.normal(k_w, (cout, cin, kh, kw), jnp.float32) * 0.1
    bias = jax.random.normal(k_b, (cout,), jnp.float32) * 0.05

    fwd = jax.jit(functools.partial(
        qnconv2d_forward, n_levels=N_levels, stride=stride, padding=padding,
        dilation=dilation, groups=groups, scale=scale, input_range=0.0))
    out = jax.block_until_ready(fwd(x, weight, bias))

    # Reference built from the same bf16-rounded operands (f32 accumulation), matching
    # the kernel's MXU input precision.
    w_q_ref = quant_jax(N_levels, weight)
    w_bf = w_q_ref.astype(jnp.bfloat16).astype(jnp.float32)
    x_bf = x.astype(jnp.bfloat16).astype(jnp.float32)
    y_ref = jax.lax.conv_general_dilated(
        x_bf, w_bf, window_strides=(stride, stride),
        padding=[(padding, padding), (padding, padding)],
        rhs_dilation=(dilation, dilation),
        dimension_numbers=('NCHW', 'OIHW', 'NCHW'),
        precision=jax.lax.Precision.HIGHEST)
    y_ref = y_ref * scale + quant_jax(N_levels, bias).reshape(1, -1, 1, 1)
    r_ref = jnp.max(jnp.abs(y_ref))
    out_ref = quant_jax(N_levels, y_ref, r_ref)

    assert out.shape == out_ref.shape == (nb, cout, hh, ww)
    # tolerance: one quant step (accumulation-order / bf16-intermediate flips) + slack
    step = float(r_ref) / N_levels
    tol = 1.05 * step + 1e-3
    err = float(jnp.max(jnp.abs(out - out_ref)))
    assert err <= tol, f"max abs err {err} exceeds tolerance {tol}"

    # exercise the fused-quantization path (input_range > 0 -> single pallas_call)
    fwd_fused = jax.jit(functools.partial(
        qnconv2d_forward, n_levels=N_levels, stride=stride, padding=padding,
        dilation=dilation, groups=groups, scale=scale, input_range=float(r_ref)))
    out_fused = jax.block_until_ready(fwd_fused(x, weight, bias))
    err2 = float(jnp.max(jnp.abs(out_fused - out_ref)))
    assert err2 <= tol, f"fused-path max abs err {err2} exceeds tolerance {tol}"

    print("KERNEL_OK")
</pallas_src>

<mosaic_0001>
module attributes {stable_mosaic.version = 11 : i64} {
  func.func @_quant_kernel(%arg0: i32, %arg1: i32, %arg2: memref<1xf32, #tpu.memory_space<smem>>, %arg3: memref<512x128xbf16, #tpu.memory_space<vmem>>, %arg4: memref<512x128xf32, #tpu.memory_space<vmem>>) attributes {dimension_semantics = [#tpu.dimension_semantics<parallel>, #tpu.dimension_semantics<parallel>], iteration_bounds = array<i64: 1, 1>, scalar_prefetch = 0 : i64, scratch_operands = 0 : i64, tpu.core_type = #tpu.core_type<tc>, window_params = [{transform_indices = @transform_0, window_bounds = array<i64: 1>}, {transform_indices = @transform_1, window_bounds = array<i64: 512, 128>}, {transform_indices = @transform_2, window_bounds = array<i64: 512, 128>}]} {
    %c0 = arith.constant 0 : index
    %0 = memref.load %arg2[%c0] : memref<1xf32, #tpu.memory_space<smem>>
    %cst = arith.constant 0.000000e+00 : f32
    %1 = arith.cmpf ogt, %0, %cst : f32
    %cst_0 = arith.constant 1.000000e+00 : f32
    %2 = arith.select %1, %0, %cst_0 : f32
    %cst_1 = arith.constant 3.200000e+01 : f32
    %3 = arith.divf %cst_1, %2 : f32
    %cst_2 = arith.constant 3.200000e+01 : f32
    %4 = arith.divf %2, %cst_2 : f32
    %c0_3 = arith.constant 0 : index
    %c0_4 = arith.constant 0 : index
    %5 = vector.load %arg3[%c0_3, %c0_4] : memref<512x128xbf16, #tpu.memory_space<vmem>>, vector<512x128xbf16>
    %6 = arith.extf %5 : vector<512x128xbf16> to vector<512x128xf32>
    %7 = vector.broadcast %3 : f32 to vector<512x128xf32>
    %8 = arith.mulf %6, %7 : vector<512x128xf32>
    %9 = math.roundeven %8 : vector<512x128xf32>
    %10 = vector.broadcast %4 : f32 to vector<512x128xf32>
    %11 = arith.mulf %9, %10 : vector<512x128xf32>
    %cst_5 = arith.constant 0.000000e+00 : f32
    %12 = arith.cmpf ogt, %0, %cst_5 : f32
    %13 = arith.select %12, %11, %6 : vector<512x128xf32>
    %c0_6 = arith.constant 0 : index
    %c0_7 = arith.constant 0 : index
    %14 = vector.load %arg4[%c0_6, %c0_7] : memref<512x128xf32, #tpu.memory_space<vmem>>, vector<512x128xf32>
    tpu.vector_store %arg4[%c0_6, %c0_7], %13 {strides = array<i32>} : memref<512x128xf32, #tpu.memory_space<vmem>>, vector<512x128xf32>,
    return
  }
  func.func @transform_0(%arg0: i32, %arg1: i32) -> i32 {
    %c0_i32 = arith.constant 0 : i32
    %c0_i32_0 = arith.constant 0 : i32
    return %c0_i32 : i32
  }
  func.func @transform_1(%arg0: i32, %arg1: i32) -> (i32, i32) {
    %c0_i32 = arith.constant 0 : i32
    return %arg0, %arg1 : i32, i32
  }
  func.func @transform_2(%arg0: i32, %arg1: i32) -> (i32, i32) {
    %c0_i32 = arith.constant 0 : i32
    return %arg0, %arg1 : i32, i32
  }
}

module attributes {stable_mosaic.version = 11 : i64} {
  func.func @_conv_mm_fullk_kernel(%arg0: i32, %arg1: i32, %arg2: memref<256x128xbf16, #tpu.memory_space<vmem>>, %arg3: memref<128x128xbf16, #tpu.memory_space<vmem>>, %arg4: memref<1x128xf32, #tpu.memory_space<vmem>>, %arg5: memref<256x128xbf16, #tpu.memory_space<vmem>>, %arg6: memref<8x128xf32, #tpu.memory_space<vmem>>) attributes {dimension_semantics = [#tpu.dimension_semantics<parallel>, #tpu.dimension_semantics<parallel>], iteration_bounds = array<i64: 2, 1>, scalar_prefetch = 0 : i64, scratch_operands = 0 : i64, tpu.core_type = #tpu.core_type<tc>, window_params = [{transform_indices = @transform_0, window_bounds = array<i64: 256, 128>}, {transform_indices = @transform_1, window_bounds = array<i64: 128, 128>}, {transform_indices = @transform_2, window_bounds = array<i64: 1, 128>}, {transform_indices = @transform_3, window_bounds = array<i64: 256, 128>}, {transform_indices = @transform_4, window_bounds = array<i64: 8, 128>}]} {
    %c0 = arith.constant 0 : index
    %c0_0 = arith.constant 0 : index
    %0 = vector.load %arg2[%c0, %c0_0] : memref<256x128xbf16, #tpu.memory_space<vmem>>, vector<256x128xbf16>
    %c0_1 = arith.constant 0 : index
    %c0_2 = arith.constant 0 : index
    %1 = vector.load %arg3[%c0_1, %c0_2] : memref<128x128xbf16, #tpu.memory_space<vmem>>, vector<128x128xbf16>
    %cst = arith.constant dense<0.000000e+00> : vector<256x128xf32>
    %2 = tpu.matmul %0, %1, %cst {dimension_numbers = #tpu.dot_dimension_numbers<[1], [0], [0], [1], [0, 0, 1, 1], [], []>} : vector<256x128xbf16>, vector<128x128xbf16>, vector<256x128xf32> -> vector<256x128xf32>
    %cst_3 = arith.constant 1.000000e+00 : f32
    %3 = vector.broadcast %cst_3 : f32 to vector<256x128xf32>
    %4 = arith.mulf %2, %3 : vector<256x128xf32>
    %c0_4 = arith.constant 0 : index
    %c0_5 = arith.constant 0 : index
    %5 = vector.load %arg4[%c0_4, %c0_5] : memref<1x128xf32, #tpu.memory_space<vmem>>, vector<1x128xf32>
    %6 = vector.broadcast %5 : vector<1x128xf32> to vector<256x128xf32>
    %7 = arith.addf %4, %6 : vector<256x128xf32>
    %8 = math.absf %7 : vector<256x128xf32>
    %9 = vector.shape_cast %8 : vector<256x128xf32> to vector<1x256x128xf32>
    %cst_6 = arith.constant dense<0xFF800000> : vector<1xf32>
    %10 = vector.multi_reduction <maximumf>, %9, %cst_6 [1, 2] : vector<1x256x128xf32> to vector<1xf32>
    %11 = vector.shape_cast %10 : vector<1xf32> to vector<1x1x1xf32>
    %12 = vector.extract %11[0, 0, 0] : f32 from vector<1x1x1xf32>
    %13 = vector.broadcast %12 : f32 to vector<8x128xf32>
    %c0_7 = arith.constant 0 : index
    %c0_8 = arith.constant 0 : index
    %14 = vector.load %arg6[%c0_7, %c0_8] : memref<8x128xf32, #tpu.memory_space<vmem>>, vector<8x128xf32>
    tpu.vector_store %arg6[%c0_7, %c0_8], %13 {strides = array<i32>} : memref<8x128xf32, #tpu.memory_space<vmem>>, vector<8x128xf32>,
    %15 = arith.truncf %7 : vector<256x128xf32> to vector<256x128xbf16>
    %c0_9 = arith.constant 0 : index
    %c0_10 = arith.constant 0 : index
    %16 = vector.load %arg5[%c0_9, %c0_10] : memref<256x128xbf16, #tpu.memory_space<vmem>>, vector<256x128xbf16>
    tpu.vector_store %arg5[%c0_9, %c0_10], %15 {strides = array<i32>} : memref<256x128xbf16, #tpu.memory_space<vmem>>, vector<256x128xbf16>,
    return
  }
  func.func @transform_0(%arg0: i32, %arg1: i32) -> (i32, i32) {
    %c0_i32 = arith.constant 0 : i32
    %c0_i32_0 = arith.constant 0 : i32
    return %arg0, %c0_i32 : i32, i32
  }
  func.func @transform_1(%arg0: i32, %arg1: i32) -> (i32, i32) {
    %c0_i32 = arith.constant 0 : i32
    %c0_i32_0 = arith.constant 0 : i32
    return %c0_i32, %arg1 : i32, i32
  }
  func.func @transform_2(%arg0: i32, %arg1: i32) -> (i32, i32) {
    %c0_i32 = arith.constant 0 : i32
    %c0_i32_0 = arith.constant 0 : i32
    return %c0_i32, %arg1 : i32, i32
  }
  func.func @transform_3(%arg0: i32, %arg1: i32) -> (i32, i32) {
    %c0_i32 = arith.constant 0 : i32
    return %arg0, %arg1 : i32, i32
  }
  func.func @transform_4(%arg0: i32, %arg1: i32) -> (i32, i32) {
    %c0_i32 = arith.constant 0 : i32
    return %arg0, %arg1 : i32, i32
  }
}

</mosaic_0001>

<llo_original>
// kernel: qnconv2d_forward.2
$region0: #{qnconv2d_forward.2}
  #allocation0 [shape = 'u32[]', space=smem, size = 0x4, offset = 0x4, fixed_abs, tag = 'smem constant byte address 0x4 - core index']
  #allocation1 [shape = 'u32[72,128]{1,0:T(1,128)}', space=vmem, size = 0x9000, scoped, tag = 'internal scratch']
  %s0 = inlined_call_operand.vmem [shape: bf16[512,128], index: 0, kind: input, shape index: {}]
  %s1 = inlined_call_operand.vmem [shape: bf16[128,128], index: 1, kind: input, shape index: {}]
  %s2 = inlined_call_operand.vmem [shape: f32[1,128], index: 2, kind: input, shape index: {}]
  %s3 = inlined_call_operand.vmem [shape: bf16[512,128], index: 3, kind: output, shape index: {0}]
  %s4 = inlined_call_operand.vmem [shape: f32[16,128], index: 4, kind: output, shape index: {1}]
  %5 = xla_tuple %s3, %s4
  %s6 = sld [smem:[#allocation0]]
  $region53: #{qnconv2d_forward.2} parent=0
    _
  %s8 = ssub.s32 1, %s6
  %s9 = scalar_select 0, %s8, %s6
  loop: start=0, step=1, limit=4
  $region2: #{qnconv2d_forward.2} parent=0 // loop_pre_header
    _
  $region3: #{qnconv2d_forward.2} parent=0 // loop_header
    %s11 = sphi 0, %s15
    %p12 = scmp.ge.s32.totalorder %s11, 4
    %s18 = sphi 0, %s30
    %s19 = sphi 0, %s26
    %s20 = sphi 0, %s18
    %s21 = sphi 0, %s19
    %s22 = sphi 0, %s20
    %s23 = sphi 0, %s21
    %s33 = sphi 0, %s35
    %s36 = sphi 0, %s33
    %s37 = sphi 0, %s36
    %s53 = sphi 0, %s37
    %s59 = sphi 0, %s61
    %s62 = sphi 0, %s59
    %s63 = sphi 0, %s62
    %s79 = sphi 0, %s63
    %s85 = sphi 0, %s87
    %s88 = sphi 0, %s85
    %s89 = sphi 0, %s88
    %s105 = sphi 0, %s89
    %s113 = sphi 0, %s115
    %s116 = sphi 0, %s113
    %s117 = sphi 0, %s116
    %s133 = sphi 0, %s117
    %s141 = sphi 0, %s143
    %s144 = sphi 0, %s141
    %s145 = sphi 0, %s144
    %s161 = sphi 0, %s145
  $region4: #{qnconv2d_forward.2} parent=0 // loop_header_branch
    %14 = sbr.rel (%p12) target = $region8
  $region5: #{qnconv2d_forward.2} parent=0 // loop_body
    %s16 = ssub.s32 %s11, 1
    %s17 = ssub.s32 %s11, 2
    %s24 = sadd.s32 1, %s19
    %p25 = scmp.ge.s32.totalorder %s24, 1
    %s26 = scalar_select %p25, 0, %s24
    %s27 = sadd.s32 1, %s18
    %s28 = scalar_select %p25, %s27, %s18
    %p29 = scmp.ge.s32.totalorder %s28, 2
    %s30 = scalar_select %p29, 0, %s28
    %s31 = ssub.s32 %s18, %s30
    %p32 = scmp.eq.s32.totalorder %s31, 0
    %s34 = sadd.s32 %s33, 1
    %s35 = scalar_select %p32, %s33, %s34
    %p38 = pneg %p32
    %p39 = scmp.eq.s32.totalorder %s11, 1
    %p40 = por %p38, %p39
    %p41 = scmp.ne.s32.totalorder %s33, %s36
    %p42 = scmp.eq.s32.totalorder %s11, 0
    %p43 = por %p41, %p42
    %p44 = scmp.ne.s32.totalorder %s33, %s36
    %p45 = scmp.eq.s32.totalorder %s16, 1
    %p46 = por %p44, %p45
    %p47 = scmp.ne.s32.totalorder %s36, %s37
    %p48 = scmp.eq.s32.totalorder %s16, 0
    %p49 = por %p47, %p48
    %p50 = scmp.ne.s32.totalorder %s36, %s37
    %p51 = scmp.eq.s32.totalorder %s17, 1
    %p52 = por %p50, %p51
    %p54 = scmp.ne.s32.totalorder %s37, %s53
    %p55 = scmp.eq.s32.totalorder %s17, 0
    %p56 = por %p54, %p55
    %s57 = ssub.s32 %s19, %s26
    %p58 = scmp.eq.s32.totalorder %s57, 0
    %s60 = sadd.s32 %s59, 1
    %s61 = scalar_select %p58, %s59, %s60
    %p64 = pneg %p58
    %p65 = scmp.eq.s32.totalorder %s11, 1
    %p66 = por %p64, %p65
    %p67 = scmp.ne.s32.totalorder %s59, %s62
    %p68 = scmp.eq.s32.totalorder %s11, 0
    %p69 = por %p67, %p68
    %p70 = scmp.ne.s32.totalorder %s59, %s62
    %p71 = scmp.eq.s32.totalorder %s16, 1
    %p72 = por %p70, %p71
    %p73 = scmp.ne.s32.totalorder %s62, %s63
    %p74 = scmp.eq.s32.totalorder %s16, 0
    %p75 = por %p73, %p74
    %p76 = scmp.ne.s32.totalorder %s62, %s63
    %p77 = scmp.eq.s32.totalorder %s17, 1
    %p78 = por %p76, %p77
    %p80 = scmp.ne.s32.totalorder %s63, %s79
    %p81 = scmp.eq.s32.totalorder %s17, 0
    %p82 = por %p80, %p81
    %s83 = ssub.s32 %s19, %s26
    %p84 = scmp.eq.s32.totalorder %s83, 0
    %s86 = sadd.s32 %s85, 1
    %s87 = scalar_select %p84, %s85, %s86
    %p90 = pneg %p84
    %p91 = scmp.eq.s32.totalorder %s11, 1
    %p92 = por %p90, %p91
    %p93 = scmp.ne.s32.totalorder %s85, %s88
    %p94 = scmp.eq.s32.totalorder %s11, 0
    %p95 = por %p93, %p94
    %p96 = scmp.ne.s32.totalorder %s85, %s88
    %p97 = scmp.eq.s32.totalorder %s16, 1
    %p98 = por %p96, %p97
    %p99 = scmp.ne.s32.totalorder %s88, %s89
    %p100 = scmp.eq.s32.totalorder %s16, 0
    %p101 = por %p99, %p100
    %p102 = scmp.ne.s32.totalorder %s88, %s89
    %p103 = scmp.eq.s32.totalorder %s17, 1
    %p104 = por %p102, %p103
    %p106 = scmp.ne.s32.totalorder %s89, %s105
    %p107 = scmp.eq.s32.totalorder %s17, 0
    %p108 = por %p106, %p107
    %s109 = ssub.s32 %s18, %s30
    %s110 = ssub.s32 %s19, %s26
    %s111 = sor.u32 %s109, %s110
    %p112 = scmp.eq.s32.totalorder %s111, 0
    %s114 = sadd.s32 %s113, 1
    %s115 = scalar_select %p112, %s113, %s114
    %p118 = pneg %p112
    %p119 = scmp.eq.s32.totalorder %s11, 1
    %p120 = por %p118, %p119
    %p121 = scmp.ne.s32.totalorder %s113, %s116
    %p122 = scmp.eq.s32.totalorder %s11, 0
    %p123 = por %p121, %p122
    %p124 = scmp.ne.s32.totalorder %s113, %s116
    %p125 = scmp.eq.s32.totalorder %s16, 1
    %p126 = por %p124, %p125
    %p127 = scmp.ne.s32.totalorder %s116, %s117
    %p128 = scmp.eq.s32.totalorder %s16, 0
    %p129 = por %p127, %p128
    %p130 = scmp.ne.s32.totalorder %s116, %s117
    %p131 = scmp.eq.s32.totalorder %s17, 1
    %p132 = por %p130, %p131
    %p134 = scmp.ne.s32.totalorder %s117, %s133
    %p135 = scmp.eq.s32.totalorder %s17, 0
    %p136 = por %p134, %p135
    %s137 = ssub.s32 %s18, %s30
    %s138 = ssub.s32 %s19, %s26
    %s139 = sor.u32 %s137, %s138
    %p140 = scmp.eq.s32.totalorder %s139, 0
    %s142 = sadd.s32 %s141, 1
    %s143 = scalar_select %p140, %s141, %s142
    %p146 = pneg %p140
    %p147 = scmp.eq.s32.totalorder %s11, 1
    %p148 = por %p146, %p147
    %p149 = scmp.ne.s32.totalorder %s141, %s144
    %p150 = scmp.eq.s32.totalorder %s11, 0
    %p151 = por %p149, %p150
    %p152 = scmp.ne.s32.totalorder %s141, %s144
    %p153 = scmp.eq.s32.totalorder %s16, 1
    %p154 = por %p152, %p153
    %p155 = scmp.ne.s32.totalorder %s144, %s145
    %p156 = scmp.eq.s32.totalorder %s16, 0
    %p157 = por %p155, %p156
    %p158 = scmp.ne.s32.totalorder %s144, %s145
    %p159 = scmp.eq.s32.totalorder %s17, 1
    %p160 = por %p158, %p159
    %p162 = scmp.ne.s32.totalorder %s145, %s161
    %p163 = scmp.eq.s32.totalorder %s17, 0
    %p164 = por %p162, %p163
    %p165 = scmp.le.s32.totalorder 1, %s11
    %p166 = scmp.lt.s32.totalorder %s11, 3
    %p167 = pnand %p165, %p166
    %p168 = pneg %p167
    // Predicated region
    $region9: #{qnconv2d_forward.2} parent=5 // pred_check
      _
    $region10: #{qnconv2d_forward.2} parent=5 // pred_check_branch
      %170 = sbr.rel (%p167) target = $region12
    $region11: #{qnconv2d_forward.2} parent=5 // pred_region
      %s171 = ssub.s32 %s11, 1
      // Predicated region
      $region13: #{qnconv2d_forward.2} parent=11 // pred_check
        %p172 = pneg %p75
      $region14: #{qnconv2d_forward.2} parent=11 // pred_check_branch
        %174 = sbr.rel (%p172) target = $region16
      $region15: #{qnconv2d_forward.2} parent=11 // pred_region
        %p175 = scmp.lt.s32.totalorder %s21, 0
        %s176 = scalar_select %p175, %s21, 0
        %s177 = smul.addr %s176, 4
        %s178 = scalar_lea.vmem %s1, %s177
      $region16: #{qnconv2d_forward.2} parent=11 // pred_fallthru
        _
      // Predicated region
      $region17: #{qnconv2d_forward.2} parent=11 // pred_check
        %p179 = pneg %p101
      $region18: #{qnconv2d_forward.2} parent=11 // pred_check_branch
        %181 = sbr.rel (%p179) target = $region20
      $region19: #{qnconv2d_forward.2} parent=11 // pred_region
        %p182 = scmp.lt.s32.totalorder %s21, 0
        %s183 = scalar_select %p182, %s21, 0
        %s184 = scalar_lea.vmem %s2, %s183
      $region20: #{qnconv2d_forward.2} parent=11 // pred_fallthru
        _
    $region12: #{qnconv2d_forward.2} parent=5 // pred_fallthru
      _
    %p185 = scmp.lt.s32.totalorder %s11, 2
    // Predicated region
    $region21: #{qnconv2d_forward.2} parent=5 // pred_check
      %p186 = pneg %p185
    $region22: #{qnconv2d_forward.2} parent=5 // pred_check_branch
      %188 = sbr.rel (%p186) target = $region24
    $region23: #{qnconv2d_forward.2} parent=5 // pred_region
      // Predicated region
      $region25: #{qnconv2d_forward.2} parent=23 // pred_check
        %p189 = pneg %p43
      $region26: #{qnconv2d_forward.2} parent=23 // pred_check_branch
        %191 = sbr.rel (%p189) target = $region28
      $region27: #{qnconv2d_forward.2} parent=23 // pred_region
        %s192 = smul.u32 32, %s18
        %p193 = scmp.lt.s32.totalorder %s192, 63
        %s194 = scalar_select %p193, %s192, 63
        %s195 = smul.addr %s194, 4
        %s196 = scalar_lea.vmem %s0, %s195
        %s197 = smul.u32 32, %s18
      $region28: #{qnconv2d_forward.2} parent=23 // pred_fallthru
        _
    $region24: #{qnconv2d_forward.2} parent=5 // pred_fallthru
      _
    %p198 = scmp.le.s32.totalorder 1, %s11
    %p199 = scmp.lt.s32.totalorder %s11, 3
    %p200 = pnand %p198, %p199
    %p201 = pneg %p200
    // Predicated region
    $region29: #{qnconv2d_forward.2} parent=5 // pred_check
      _
    $region30: #{qnconv2d_forward.2} parent=5 // pred_check_branch
      %203 = sbr.rel (%p200) target = $region32
    $region31: #{qnconv2d_forward.2} parent=5 // pred_region
      %s204 = ssub.s32 %s11, 1
      %s205 = smul.u32 32, %s20
      %p206 = scmp.lt.s32.totalorder %s205, 63
      %s207 = scalar_select %p206, %s205, 63
      %s208 = smul.addr %s207, 4
      %s209 = scalar_lea.vmem %s0, %s208
      %p210 = pneg %p49
      %p211 = pneg %p46
      %p212 = scmp.lt.s32.totalorder %s21, 0
      %s213 = scalar_select %p212, %s21, 0
      %s214 = smul.addr %s213, 4
      %s215 = scalar_lea.vmem %s1, %s214
      %p216 = pneg %p75
      %p217 = pneg %p72
      %p218 = scmp.lt.s32.totalorder %s21, 0
      %s219 = scalar_select %p218, %s21, 0
      %s220 = scalar_lea.vmem %s2, %s219
      %p221 = pneg %p101
      %p222 = pneg %p98
      %p223 = pneg %p129
      %p224 = pneg %p126
      %s225 = smul.u32 32, %s20
      %p226 = scmp.lt.s32.totalorder %s225, 63
      %s227 = scalar_select %p226, %s225, 63
      %p228 = scmp.lt.s32.totalorder %s21, 0
      %s229 = scalar_select %p228, %s21, 0
      %s230 = sadd.s32 %s229, %s227
      %s231 = smul.addr %s230, 4
      %s232 = scalar_lea.vmem %s3, %s231
      %p233 = pneg %p157
      %p234 = pneg %p154
      %p235 = scmp.lt.s32.totalorder %s20, 1
      %s236 = scalar_select %p235, %s20, 1
      %p237 = scmp.lt.s32.totalorder %s21, 0
      %s238 = scalar_select %p237, %s21, 0
      %s239 = sadd.s32 %s238, %s236
      %s240 = smul.addr %s239, 8
      %s241 = scalar_lea.vmem %s4, %s240
      %s242 = smul.u32 32, %s20
      %p243 = scmp.lt.s32.totalorder %s242, 63
      %s244 = scalar_select %p243, %s242, 63
      %s245 = smul.addr %s244, 4
      %s246 = scalar_lea.vmem %s0, %s245
      %s247 = smul.u32 32, %s20
      %p248 = scmp.lt.s32.totalorder %s21, 0
      %s249 = scalar_select %p248, %s21, 0
      %s250 = smul.addr %s249, 4
      %s251 = scalar_lea.vmem %s1, %s250
      %p252 = scmp.lt.s32.totalorder %s21, 0
      %s253 = scalar_select %p252, %s21, 0
      %s254 = scalar_lea.vmem %s2, %s253
      %s255 = smul.u32 32, %s20
      %p256 = scmp.lt.s32.totalorder %s255, 63
      %s257 = scalar_select %p256, %s255, 63
      %p258 = scmp.lt.s32.totalorder %s21, 0
      %s259 = scalar_select %p258, %s21, 0
      %s260 = sadd.s32 %s259, %s257
      %s261 = smul.addr %s260, 4
      %s262 = scalar_lea.vmem %s3, %s261
      %s263 = smul.u32 32, %s20
      %p264 = scmp.lt.s32.totalorder %s20, 1
      %s265 = scalar_select %p264, %s20, 1
      %p266 = scmp.lt.s32.totalorder %s21, 0
      %s267 = scalar_select %p266, %s21, 0
      %s268 = sadd.s32 %s267, %s265
      %s269 = smul.addr %s268, 8
      %s270 = scalar_lea.vmem %s4, %s269
      %v271 = vld [vmem:[%s246] sm:$0xf]
      %v272 = vld [vmem:[%s246 + $0x4] sm:$0xf]
      %v273 = vld [vmem:[%s246 + $0x8] sm:$0xf]
      %v274 = vld [vmem:[%s246 + $0xc] sm:$0xf]
      %v275 = vld [vmem:[%s246 + $0x10] sm:$0xf]
      %v276 = vld [vmem:[%s246 + $0x14] sm:$0xf]
      %v277 = vld [vmem:[%s246 + $0x18] sm:$0xf]
      %v278 = vld [vmem:[%s246 + $0x1c] sm:$0xf]
      %v279 = vld [vmem:[%s246 + $0x20] sm:$0xf]
      %v280 = vld [vmem:[%s246 + $0x24] sm:$0xf]
      %v281 = vld [vmem:[%s246 + $0x28] sm:$0xf]
      %v282 = vld [vmem:[%s246 + $0x2c] sm:$0xf]
      %v283 = vld [vmem:[%s246 + $0x30] sm:$0xf]
      %v284 = vld [vmem:[%s246 + $0x34] sm:$0xf]
      %v285 = vld [vmem:[%s246 + $0x38] sm:$0xf]
      %v286 = vld [vmem:[%s246 + $0x3c] sm:$0xf]
      %v287 = vld [vmem:[%s246 + $0x40] sm:$0xf]
      %v288 = vld [vmem:[%s246 + $0x44] sm:$0xf]
      %v289 = vld [vmem:[%s246 + $0x48] sm:$0xf]
      %v290 = vld [vmem:[%s246 + $0x4c] sm:$0xf]
      %v291 = vld [vmem:[%s246 + $0x50] sm:$0xf]
      %v292 = vld [vmem:[%s246 + $0x54] sm:$0xf]
      %v293 = vld [vmem:[%s246 + $0x58] sm:$0xf]
      %v294 = vld [vmem:[%s246 + $0x5c] sm:$0xf]
      %v295 = vld [vmem:[%s246 + $0x60] sm:$0xf]
      %v296 = vld [vmem:[%s246 + $0x64] sm:$0xf]
      %v297 = vld [vmem:[%s246 + $0x68] sm:$0xf]
      %v298 = vld [vmem:[%s246 + $0x6c] sm:$0xf]
      %v299 = vld [vmem:[%s246 + $0x70] sm:$0xf]
      %v300 = vld [vmem:[%s246 + $0x74] sm:$0xf]
      %v301 = vld [vmem:[%s246 + $0x78] sm:$0xf]
      %v302 = vld [vmem:[%s246 + $0x7c] sm:$0xf]
      %v303 = vld [vmem:[%s251] sm:$0xf]
      %v304 = vld [vmem:[%s251 + $0x4] sm:$0xf]
      %v305 = vld [vmem:[%s251 + $0x8] sm:$0xf]
      %v306 = vld [vmem:[%s251 + $0xc] sm:$0xf]
      %v307 = vld [vmem:[%s251 + $0x10] sm:$0xf]
      %v308 = vld [vmem:[%s251 + $0x14] sm:$0xf]
      %v309 = vld [vmem:[%s251 + $0x18] sm:$0xf]
      %v310 = vld [vmem:[%s251 + $0x1c] sm:$0xf]
      %v311 = vld [vmem:[%s251 + $0x20] sm:$0xf]
      %v312 = vld [vmem:[%s251 + $0x24] sm:$0xf]
      %v313 = vld [vmem:[%s251 + $0x28] sm:$0xf]
      %v314 = vld [vmem:[%s251 + $0x2c] sm:$0xf]
      %v315 = vld [vmem:[%s251 + $0x30] sm:$0xf]
      %v316 = vld [vmem:[%s251 + $0x34] sm:$0xf]
      %v317 = vld [vmem:[%s251 + $0x38] sm:$0xf]
      %v318 = vld [vmem:[%s251 + $0x3c] sm:$0xf]
      %v319 = vld [vmem:[%s254] sm:$0x1]
      %v321 = vperm.slane %v319, 0
      %v355 = vunpack.c.l.b16 %v271
      %v356 = vunpack.c.l.b16 %v272
      %v357 = vunpack.c.l.b16 %v273
      %v358 = vunpack.c.l.b16 %v274
      %v359 = vunpack.c.l.b16 %v275
      %v360 = vunpack.c.l.b16 %v276
      %v361 = vunpack.c.l.b16 %v277
      %v362 = vunpack.c.l.b16 %v278
      %v363 = vunpack.c.l.b16 %v279
      %v364 = vunpack.c.l.b16 %v280
      %v365 = vunpack.c.l.b16 %v281
      %v366 = vunpack.c.l.b16 %v282
      %v367 = vunpack.c.l.b16 %v283
      %v368 = vunpack.c.l.b16 %v284
      %v369 = vunpack.c.l.b16 %v285
      %v370 = vunpack.c.l.b16 %v286
      %v371 = vunpack.c.l.b16 %v287
      %v372 = vunpack.c.l.b16 %v288
      %v373 = vunpack.c.l.b16 %v289
      %v374 = vunpack.c.l.b16 %v290
      %v375 = vunpack.c.l.b16 %v291
      %v376 = vunpack.c.l.b16 %v292
      %v377 = vunpack.c.l.b16 %v293
      %v378 = vunpack.c.l.b16 %v294
      %v379 = vunpack.c.l.b16 %v295
      %v380 = vunpack.c.l.b16 %v296
      %v381 = vunpack.c.l.b16 %v297
      %v382 = vunpack.c.l.b16 %v298
      %v383 = vunpack.c.l.b16 %v299
      %v384 = vunpack.c.l.b16 %v300
      %v385 = vunpack.c.l.b16 %v301
      %v386 = vunpack.c.l.b16 %v302
      %v387 = vpack.c.b16 %v356, %v355
      %v388 = vpack.c.b16 %v358, %v357
      %v389 = vpack.c.b16 %v360, %v359
      %v390 = vpack.c.b16 %v362, %v361
      %v391 = vpack.c.b16 %v364, %v363
      %v392 = vpack.c.b16 %v366, %v365
      %v393 = vpack.c.b16 %v368, %v367
      %v394 = vpack.c.b16 %v370, %v369
      %v395 = vpack.c.b16 %v372, %v371
      %v396 = vpack.c.b16 %v374, %v373
      %v397 = vpack.c.b16 %v376, %v375
      %v398 = vpack.c.b16 %v378, %v377
      %v399 = vpack.c.b16 %v380, %v379
      %v400 = vpack.c.b16 %v382, %v381
      %v401 = vpack.c.b16 %v384, %v383
      %v402 = vpack.c.b16 %v386, %v385
      %v435 = vunpack.c.l.b16 %v303
      %v436 = vunpack.c.l.b16 %v304
      %v437 = vunpack.c.l.b16 %v305
      %v438 = vunpack.c.l.b16 %v306
      %v439 = vunpack.c.l.b16 %v307
      %v440 = vunpack.c.l.b16 %v308
      %v441 = vunpack.c.l.b16 %v309
      %v442 = vunpack.c.l.b16 %v310
      %v443 = vunpack.c.l.b16 %v311
      %v444 = vunpack.c.l.b16 %v312
      %v445 = vunpack.c.l.b16 %v313
      %v446 = vunpack.c.l.b16 %v314
      %v447 = vunpack.c.l.b16 %v315
      %v448 = vunpack.c.l.b16 %v316
      %v449 = vunpack.c.l.b16 %v317
      %v450 = vunpack.c.l.b16 %v318
      %v451 = vpack.c.b16 %v436, %v435
      %v452 = vpack.c.b16 %v438, %v437
      %v453 = vpack.c.b16 %v440, %v439
      %v454 = vpack.c.b16 %v442, %v441
      %v455 = vpack.c.b16 %v444, %v443
      %v456 = vpack.c.b16 %v446, %v445
      %v457 = vpack.c.b16 %v448, %v447
      %v458 = vpack.c.b16 %v450, %v449
      %467 = vmatpush.bf16.msra.mxu0 %v458
      %468 = vmatpush.bf16.msra.mxu0 %v457
      %469 = vmatpush.bf16.msra.mxu0 %v456
      %470 = vmatpush.bf16.msra.mxu0 %v455
      %471 = vmatpush.bf16.msra.mxu0 %v454
      %472 = vmatpush.bf16.msra.mxu0 %v453
      %473 = vmatpush.bf16.msra.mxu0 %v452
      %474 = vmatpush.bf16.msra.mxu0 %v451
      %475 = vmatmul.bf16.gmra.mxu0 %v387
      %v476 = vpop.f32.mrf.mxu0
      %v477 = vadd.f32 %v321, %v476
      %v478 = vpop.f32.mrf.mxu0
      %v479 = vadd.f32 %v321, %v478
      %480 = vmatmul.bf16.gmra.mxu0 %v388
      %v481 = vpop.f32.mrf.mxu0
      %v482 = vadd.f32 %v321, %v481
      %v483 = vpop.f32.mrf.mxu0
      %v484 = vadd.f32 %v321, %v483
      %485 = vmatmul.bf16.gmra.mxu0 %v389
      %v486 = vpop.f32.mrf.mxu0
      %v487 = vadd.f32 %v321, %v486
      %v488 = vpop.f32.mrf.mxu0
      %v489 = vadd.f32 %v321, %v488
      %490 = vmatmul.bf16.gmra.mxu0 %v390
      %v491 = vpop.f32.mrf.mxu0
      %v492 = vadd.f32 %v321, %v491
      %v493 = vpop.f32.mrf.mxu0
      %v494 = vadd.f32 %v321, %v493
      %495 = vmatmul.bf16.gmra.mxu0 %v391
      %v496 = vpop.f32.mrf.mxu0
      %v497 = vadd.f32 %v321, %v496
      %v498 = vpop.f32.mrf.mxu0
      %v499 = vadd.f32 %v321, %v498
      %500 = vmatmul.bf16.gmra.mxu0 %v392
      %v501 = vpop.f32.mrf.mxu0
      %v502 = vadd.f32 %v321, %v501
      %v503 = vpop.f32.mrf.mxu0
      %v504 = vadd.f32 %v321, %v503
      %505 = vmatmul.bf16.gmra.mxu0 %v393
      %v506 = vpop.f32.mrf.mxu0
      %v507 = vadd.f32 %v321, %v506
      %v508 = vpop.f32.mrf.mxu0
      %v509 = vadd.f32 %v321, %v508
      %510 = vmatmul.bf16.gmra.mxu0 %v394
      %v511 = vpop.f32.mrf.mxu0
      %v512 = vadd.f32 %v321, %v511
      %v513 = vpop.f32.mrf.mxu0
      %v514 = vadd.f32 %v321, %v513
      %515 = vmatmul.bf16.gmra.mxu0 %v395
      %v516 = vpop.f32.mrf.mxu0
      %v517 = vadd.f32 %v321, %v516
      %v518 = vpop.f32.mrf.mxu0
      %v519 = vadd.f32 %v321, %v518
      %520 = vmatmul.bf16.gmra.mxu0 %v396
      %v521 = vpop.f32.mrf.mxu0
      %v522 = vadd.f32 %v321, %v521
      %v523 = vpop.f32.mrf.mxu0
      %v524 = vadd.f32 %v321, %v523
      %525 = vmatmul.bf16.gmra.mxu0 %v397
      %v526 = vpop.f32.mrf.mxu0
      %v527 = vadd.f32 %v321, %v526
      %v528 = vpop.f32.mrf.mxu0
      %v529 = vadd.f32 %v321, %v528
      %530 = vmatmul.bf16.gmra.mxu0 %v398
      %v531 = vpop.f32.mrf.mxu0
      %v532 = vadd.f32 %v321, %v531
      %v533 = vpop.f32.mrf.mxu0
      %v534 = vadd.f32 %v321, %v533
      %535 = vmatmul.bf16.gmra.mxu0 %v399
      %v536 = vpop.f32.mrf.mxu0
      %v537 = vadd.f32 %v321, %v536
      %v538 = vpop.f32.mrf.mxu0
      %v539 = vadd.f32 %v321, %v538
      %540 = vmatmul.bf16.gmra.mxu0 %v400
      %v541 = vpop.f32.mrf.mxu0
      %v542 = vadd.f32 %v321, %v541
      %v543 = vpop.f32.mrf.mxu0
      %v544 = vadd.f32 %v321, %v543
      %545 = vmatmul.bf16.gmra.mxu0 %v401
      %v546 = vpop.f32.mrf.mxu0
      %v547 = vadd.f32 %v321, %v546
      %v548 = vpop.f32.mrf.mxu0
      %v549 = vadd.f32 %v321, %v548
      %550 = vmatmul.bf16.gmra.mxu0 %v402
      %v551 = vpop.f32.mrf.mxu0
      %v552 = vadd.f32 %v321, %v551
      %v553 = vpop.f32.mrf.mxu0
      %v554 = vadd.f32 %v321, %v553
      %555 = vdwg.mxu0
      %v556 = vand.u32 2147483647, %v477
      %v557 = vand.u32 2147483647, %v479
      %v558 = vand.u32 2147483647, %v482
      %v559 = vand.u32 2147483647, %v484
      %v560 = vand.u32 2147483647, %v487
      %v561 = vand.u32 2147483647, %v489
      %v562 = vand.u32 2147483647, %v492
      %v563 = vand.u32 2147483647, %v494
      %v564 = vand.u32 2147483647, %v497
      %v565 = vand.u32 2147483647, %v499
      %v566 = vand.u32 2147483647, %v502
      %v567 = vand.u32 2147483647, %v504
      %v568 = vand.u32 2147483647, %v507
      %v569 = vand.u32 2147483647, %v509
      %v570 = vand.u32 2147483647, %v512
      %v571 = vand.u32 2147483647, %v514
      %v572 = vand.u32 2147483647, %v517
      %v573 = vand.u32 2147483647, %v519
      %v574 = vand.u32 2147483647, %v522
      %v575 = vand.u32 2147483647, %v524
      %v576 = vand.u32 2147483647, %v527
      %v577 = vand.u32 2147483647, %v529
      %v578 = vand.u32 2147483647, %v532
      %v579 = vand.u32 2147483647, %v534
      %v580 = vand.u32 2147483647, %v537
      %v581 = vand.u32 2147483647, %v539
      %v582 = vand.u32 2147483647, %v542
      %v583 = vand.u32 2147483647, %v544
      %v584 = vand.u32 2147483647, %v547
      %v585 = vand.u32 2147483647, %v549
      %v586 = vand.u32 2147483647, %v552
      %v587 = vand.u32 2147483647, %v554
      %v588 = vmax.f32 %v556, %v560
      %v589 = vmax.f32 %v557, %v561
      %v590 = vmax.f32 %v558, %v562
      %v591 = vmax.f32 %v559, %v563
      %v592 = vmax.f32 %v588, %v564
      %v593 = vmax.f32 %v589, %v565
      %v594 = vmax.f32 %v590, %v566
      %v595 = vmax.f32 %v591, %v567
      %v596 = vmax.f32 %v592, %v568
      %v597 = vmax.f32 %v593, %v569
      %v598 = vmax.f32 %v594, %v570
      %v599 = vmax.f32 %v595, %v571
      %v600 = vmax.f32 %v596, %v572
      %v601 = vmax.f32 %v597, %v573
      %v602 = vmax.f32 %v598, %v574
      %v603 = vmax.f32 %v599, %v575
      %v604 = vmax.f32 %v600, %v576
      %v605 = vmax.f32 %v601, %v577
      %v606 = vmax.f32 %v602, %v578
      %v607 = vmax.f32 %v603, %v579
      %v608 = vmax.f32 %v604, %v580
      %v609 = vmax.f32 %v605, %v581
      %v610 = vmax.f32 %v606, %v582
      %v611 = vmax.f32 %v607, %v583
      %v612 = vmax.f32 %v608, %v584
      %v613 = vmax.f32 %v609, %v585
      %v614 = vmax.f32 %v610, %v586
      %v615 = vmax.f32 %v611, %v587
      %v616 = vmax.f32 %v612, %v613
      %v617 = vmax.f32 %v614, %v615
      %v618 = vmax.f32 %v616, %v617
      %619 = vmax.xlane.f32.xlu0 %v618
      %v620 = vpop.xlane.xlu0 %619
      %v621 = vrot.slane %v620, 4
      %v622 = vmax.f32 %v620, %v621
      %v623 = vrot.slane %v622, 2
      %v624 = vmax.f32 %v622, %v623
      %v625 = vrot.slane %v624, 1
      %v626 = vmax.f32 %v624, %v625
      %s627 = vtos %v626
      %v628 = vstv %s627
      %629 = vst [vmem:[%s270] sm:$0xff] %v628
      %v630 = vpack.c.bf16 %v477, %v477
      %v631 = vpack.c.bf16 %v479, %v479
      %v632 = vpack.c.bf16 %v482, %v482
      %v633 = vpack.c.bf16 %v484, %v484
      %v634 = vpack.c.bf16 %v487, %v487
      %v635 = vpack.c.bf16 %v489, %v489
      %v636 = vpack.c.bf16 %v492, %v492
      %v637 = vpack.c.bf16 %v494, %v494
      %v638 = vpack.c.bf16 %v497, %v497
      %v639 = vpack.c.bf16 %v499, %v499
      %v640 = vpack.c.bf16 %v502, %v502
      %v641 = vpack.c.bf16 %v504, %v504
      %v642 = vpack.c.bf16 %v507, %v507
      %v643 = vpack.c.bf16 %v509, %v509
      %v644 = vpack.c.bf16 %v512, %v512
      %v645 = vpack.c.bf16 %v514, %v514
      %v646 = vpack.c.bf16 %v517, %v517
      %v647 = vpack.c.bf16 %v519, %v519
      %v648 = vpack.c.bf16 %v522, %v522
      %v649 = vpack.c.bf16 %v524, %v524
      %v650 = vpack.c.bf16 %v527, %v527
      %v651 = vpack.c.bf16 %v529, %v529
      %v652 = vpack.c.bf16 %v532, %v532
      %v653 = vpack.c.bf16 %v534, %v534
      %v654 = vpack.c.bf16 %v537, %v537
      %v655 = vpack.c.bf16 %v539, %v539
      %v656 = vpack.c.bf16 %v542, %v542
      %v657 = vpack.c.bf16 %v544, %v544
      %v658 = vpack.c.bf16 %v547, %v547
      %v659 = vpack.c.bf16 %v549, %v549
      %v660 = vpack.c.bf16 %v552, %v552
      %v661 = vpack.c.bf16 %v554, %v554
      %662 = vst [vmem:[%s262] sm:$0xf] %v630
      %663 = vst [vmem:[%s262 + $0x4] sm:$0xf] %v631
      %664 = vst [vmem:[%s262 + $0x8] sm:$0xf] %v632
      %665 = vst [vmem:[%s262 + $0xc] sm:$0xf] %v633
      %666 = vst [vmem:[%s262 + $0x10] sm:$0xf] %v634
      %667 = vst [vmem:[%s262 + $0x14] sm:$0xf] %v635
      %668 = vst [vmem:[%s262 + $0x18] sm:$0xf] %v636
      %669 = vst [vmem:[%s262 + $0x1c] sm:$0xf] %v637
      %670 = vst [vmem:[%s262 + $0x20] sm:$0xf] %v638
      %671 = vst [vmem:[%s262 + $0x24] sm:$0xf] %v639
      %672 = vst [vmem:[%s262 + $0x28] sm:$0xf] %v640
      %673 = vst [vmem:[%s262 + $0x2c] sm:$0xf] %v641
      %674 = vst [vmem:[%s262 + $0x30] sm:$0xf] %v642
      %675 = vst [vmem:[%s262 + $0x34] sm:$0xf] %v643
      %676 = vst [vmem:[%s262 + $0x38] sm:$0xf] %v644
      %677 = vst [vmem:[%s262 + $0x3c] sm:$0xf] %v645
      %678 = vst [vmem:[%s262 + $0x40] sm:$0xf] %v646
      %679 = vst [vmem:[%s262 + $0x44] sm:$0xf] %v647
      %680 = vst [vmem:[%s262 + $0x48] sm:$0xf] %v648
      %681 = vst [vmem:[%s262 + $0x4c] sm:$0xf] %v649
      %682 = vst [vmem:[%s262 + $0x50] sm:$0xf] %v650
      %683 = vst [vmem:[%s262 + $0x54] sm:$0xf] %v651
      %684 = vst [vmem:[%s262 + $0x58] sm:$0xf] %v652
      %685 = vst [vmem:[%s262 + $0x5c] sm:$0xf] %v653
      %686 = vst [vmem:[%s262 + $0x60] sm:$0xf] %v654
      %687 = vst [vmem:[%s262 + $0x64] sm:$0xf] %v655
      %688 = vst [vmem:[%s262 + $0x68] sm:$0xf] %v656
      %689 = vst [vmem:[%s262 + $0x6c] sm:$0xf] %v657
      %690 = vst [vmem:[%s262 + $0x70] sm:$0xf] %v658
      %691 = vst [vmem:[%s262 + $0x74] sm:$0xf] %v659
      %692 = vst [vmem:[%s262 + $0x78] sm:$0xf] %v660
      %693 = vst [vmem:[%s262 + $0x7c] sm:$0xf] %v661
      %s694 = smul.u32 32, %s20
      %p695 = scmp.lt.s32.totalorder %s694, 63
      %s696 = scalar_select %p695, %s694, 63
      %p697 = scmp.lt.s32.totalorder %s21, 0
      %s698 = scalar_select %p697, %s21, 0
      %s699 = sadd.s32 %s698, %s696
      %s700 = smul.addr %s699, 4
      %s701 = scalar_lea.vmem %s3, %s700
      %p702 = scmp.lt.s32.totalorder %s20, 1
      %s703 = scalar_select %p702, %s20, 1
      %p704 = scmp.lt.s32.totalorder %s21, 0
      %s705 = scalar_select %p704, %s21, 0
      %s706 = sadd.s32 %s705, %s703
      %s707 = smul.addr %s706, 8
      %s708 = scalar_lea.vmem %s4, %s707
      // Predicated region
      $region33: #{qnconv2d_forward.2} parent=31 // pred_check
        %p709 = pneg %p126
      $region34: #{qnconv2d_forward.2} parent=31 // pred_check_branch
        %711 = sbr.rel (%p709) target = $region36
      $region35: #{qnconv2d_forward.2} parent=31 // pred_region
        %s712 = smul.u32 32, %s20
      $region36: #{qnconv2d_forward.2} parent=31 // pred_fallthru
        _
      // Predicated region
      $region37: #{qnconv2d_forward.2} parent=31 // pred_check
        %p713 = pneg %p154
      $region38: #{qnconv2d_forward.2} parent=31 // pred_check_branch
        %715 = sbr.rel (%p713) target = $region40
      $region39: #{qnconv2d_forward.2} parent=31 // pred_region
        _
      $region40: #{qnconv2d_forward.2} parent=31 // pred_fallthru
        _
    $region32: #{qnconv2d_forward.2} parent=5 // pred_fallthru
      _
    %p716 = scmp.le.s32.totalorder 2, %s11
    // Predicated region
    $region41: #{qnconv2d_forward.2} parent=5 // pred_check
      %p717 = pneg %p716
    $region42: #{qnconv2d_forward.2} parent=5 // pred_check_branch
      %719 = sbr.rel (%p717) target = $region44
    $region43: #{qnconv2d_forward.2} parent=5 // pred_region
      %s720 = ssub.s32 %s11, 2
      // Predicated region
      $region45: #{qnconv2d_forward.2} parent=43 // pred_check
        %p721 = pneg %p132
      $region46: #{qnconv2d_forward.2} parent=43 // pred_check_branch
        %723 = sbr.rel (%p721) target = $region48
      $region47: #{qnconv2d_forward.2} parent=43 // pred_region
        %s724 = smul.u32 32, %s22
        %p725 = scmp.lt.s32.totalorder %s724, 63
        %s726 = scalar_select %p725, %s724, 63
        %p727 = scmp.lt.s32.totalorder %s23, 0
        %s728 = scalar_select %p727, %s23, 0
        %s729 = sadd.s32 %s728, %s726
        %s730 = smul.addr %s729, 4
        %s731 = scalar_lea.vmem %s3, %s730
      $region48: #{qnconv2d_forward.2} parent=43 // pred_fallthru
        _
      // Predicated region
      $region49: #{qnconv2d_forward.2} parent=43 // pred_check
        %p732 = pneg %p160
      $region50: #{qnconv2d_forward.2} parent=43 // pred_check_branch
        %734 = sbr.rel (%p732) target = $region52
      $region51: #{qnconv2d_forward.2} parent=43 // pred_region
        %p735 = scmp.lt.s32.totalorder %s22, 1
        %s736 = scalar_select %p735, %s22, 1
        %p737 = scmp.lt.s32.totalorder %s23, 0
        %s738 = scalar_select %p737, %s23, 0
        %s739 = sadd.s32 %s738, %s736
        %s740 = smul.addr %s739, 8
        %s741 = scalar_lea.vmem %s4, %s740
      $region52: #{qnconv2d_forward.2} parent=43 // pred_fallthru
        _
    $region44: #{qnconv2d_forward.2} parent=5 // pred_fallthru
      _
  $region6: #{qnconv2d_forward.2} parent=0 // loop_footer
    %s15 = sadd.s32 1, %s11
  $region7: #{qnconv2d_forward.2} parent=0 // loop_footer_branch
    %10 = sbr.rel target = $region3
  $region8: #{qnconv2d_forward.2} parent=0 // loop_exit
    _

// kernel: qnconv2d_forward.3
$region0: #{qnconv2d_forward.3}
  #allocation0 [shape = 'u32[]', space=smem, size = 0x4, offset = 0x4, fixed_abs, tag = 'smem constant byte address 0x4 - core index']
  #allocation1 [shape = 'u32[72,128]{1,0:T(1,128)}', space=vmem, size = 0x9000, scoped, tag = 'internal scratch']
  #allocation2 [shape = 'f32[1]{0:T(128)S(6)}', space=smem, size = 0x200, scoped, tag = 'scoped memory for qnconv2d_forward.3']
  %s0 = inlined_call_operand.<no memory space> [shape: f32[1], index: 0, kind: input, shape index: {}]
  %s1 = inlined_call_operand.vmem [shape: bf16[512,128], index: 1, kind: input, shape index: {}]
  %s2 = inlined_call_operand.vmem [shape: f32[512,128], index: 2, kind: output, shape index: {}]
  %s3 = sld [smem:[#allocation0]]
  $region18: #{qnconv2d_forward.3} parent=0
    _
  %s5 = ssub.s32 1, %s3
  %s6 = scalar_select 0, %s5, %s3
  %7 = sst [smem:[#allocation2]] %s0
  // Predicated region
  $region2: #{qnconv2d_forward.3} parent=0 // pred_check
    _
  $region3: #{qnconv2d_forward.3} parent=0 // pred_check_branch
    %9 = sbr.rel (0) target = $region5
  $region4: #{qnconv2d_forward.3} parent=0 // pred_region
    _
  $region5: #{qnconv2d_forward.3} parent=0 // pred_fallthru
    _
  // Predicated region
  $region6: #{qnconv2d_forward.3} parent=0 // pred_check
    _
  $region7: #{qnconv2d_forward.3} parent=0 // pred_check_branch
    %11 = sbr.rel (0) target = $region9
  $region8: #{qnconv2d_forward.3} parent=0 // pred_region
    _
  $region9: #{qnconv2d_forward.3} parent=0 // pred_fallthru
    _
  %s12 = sld [smem:[#allocation2]]
  %p13 = scmp.gt.f32.partialorder %s12, 0.0
  %s14 = scalar_select %p13, %s12, 1.0
  %v15 = vstv %s14
  %v16 = vrcp.pop %v15
  %v17 = vmul.f32 %v15, %v16
  %v18 = vsub.f32 1.0, %v17
  %v19 = vmul.f32 %v16, %v18
  %v20 = vadd.f32 %v16, %v19
  %vm21 = vweird.f32 %v15
  %vm22 = vweird.f32 %v16
  %vm23 = vmor %vm21, %vm22
  %v24 = vsel %vm23, %v16, %v20
  %v25 = vand.u32 2147483647, %v15
  %vm26 = vcmp.eq.f32.partialorder %v25, 8.507059e+37
  %v27 = vand.u32 %v15, 2147483648
  %v28 = vor.u32 1.1754944e-38, %v27
  %v29 = vsel %vm26, %v28, %v24
  %s30 = vtos %v29
  %s31 = smul.f32 32.0, %s30
  %v32 = vrcp.pop 32.0
  %v33 = vmul.f32 32.0, %v32
  %v34 = vsub.f32 1.0, %v33
  %v35 = vmul.f32 %v32, %v34
  %v36 = vadd.f32 %v32, %v35
  %vm37 = vweird.f32 %v32
  %v38 = vsel %vm37, %v32, %v36
  %s39 = vtos %v38
  %s40 = smul.f32 %s14, %s39
  %v41 = vld [vmem:[%s1] sm:$0xf]
  %v42 = vld [vmem:[%s1 + $0x4] sm:$0xf]
  %v43 = vld [vmem:[%s1 + $0x8] sm:$0xf]
  %v44 = vld [vmem:[%s1 + $0xc] sm:$0xf]
  %v45 = vld [vmem:[%s1 + $0x10] sm:$0xf]
  %v46 = vld [vmem:[%s1 + $0x14] sm:$0xf]
  %v47 = vld [vmem:[%s1 + $0x18] sm:$0xf]
  %v48 = vld [vmem:[%s1 + $0x1c] sm:$0xf]
  %v49 = vld [vmem:[%s1 + $0x20] sm:$0xf]
  %v50 = vld [vmem:[%s1 + $0x24] sm:$0xf]
  %v51 = vld [vmem:[%s1 + $0x28] sm:$0xf]
  %v52 = vld [vmem:[%s1 + $0x2c] sm:$0xf]
  %v53 = vld [vmem:[%s1 + $0x30] sm:$0xf]
  %v54 = vld [vmem:[%s1 + $0x34] sm:$0xf]
  %v55 = vld [vmem:[%s1 + $0x38] sm:$0xf]
  %v56 = vld [vmem:[%s1 + $0x3c] sm:$0xf]
  %v57 = vld [vmem:[%s1 + $0x40] sm:$0xf]
  %v58 = vld [vmem:[%s1 + $0x44] sm:$0xf]
  %v59 = vld [vmem:[%s1 + $0x48] sm:$0xf]
  %v60 = vld [vmem:[%s1 + $0x4c] sm:$0xf]
  %v61 = vld [vmem:[%s1 + $0x50] sm:$0xf]
  %v62 = vld [vmem:[%s1 + $0x54] sm:$0xf]
  %v63 = vld [vmem:[%s1 + $0x58] sm:$0xf]
  %v64 = vld [vmem:[%s1 + $0x5c] sm:$0xf]
  %v65 = vld [vmem:[%s1 + $0x60] sm:$0xf]
  %v66 = vld [vmem:[%s1 + $0x64] sm:$0xf]
  %v67 = vld [vmem:[%s1 + $0x68] sm:$0xf]
  %v68 = vld [vmem:[%s1 + $0x6c] sm:$0xf]
  %v69 = vld [vmem:[%s1 + $0x70] sm:$0xf]
  %v70 = vld [vmem:[%s1 + $0x74] sm:$0xf]
  %v71 = vld [vmem:[%s1 + $0x78] sm:$0xf]
  %v72 = vld [vmem:[%s1 + $0x7c] sm:$0xf]
  %v73 = vld [vmem:[%s1 + $0x80] sm:$0xf]
  %v74 = vld [vmem:[%s1 + $0x84] sm:$0xf]
  %v75 = vld [vmem:[%s1 + $0x88] sm:$0xf]
  %v76 = vld [vmem:[%s1 + $0x8c] sm:$0xf]
  %v77 = vld [vmem:[%s1 + $0x90] sm:$0xf]
  %v78 = vld [vmem:[%s1 + $0x94] sm:$0xf]
  %v79 = vld [vmem:[%s1 + $0x98] sm:$0xf]
  %v80 = vld [vmem:[%s1 + $0x9c] sm:$0xf]
  %v81 = vld [vmem:[%s1 + $0xa0] sm:$0xf]
  %v82 = vld [vmem:[%s1 + $0xa4] sm:$0xf]
  %v83 = vld [vmem:[%s1 + $0xa8] sm:$0xf]
  %v84 = vld [vmem:[%s1 + $0xac] sm:$0xf]
  %v85 = vld [vmem:[%s1 + $0xb0] sm:$0xf]
  %v86 = vld [vmem:[%s1 + $0xb4] sm:$0xf]
  %v87 = vld [vmem:[%s1 + $0xb8] sm:$0xf]
  %v88 = vld [vmem:[%s1 + $0xbc] sm:$0xf]
  %v89 = vld [vmem:[%s1 + $0xc0] sm:$0xf]
  %v90 = vld [vmem:[%s1 + $0xc4] sm:$0xf]
  %v91 = vld [vmem:[%s1 + $0xc8] sm:$0xf]
  %v92 = vld [vmem:[%s1 + $0xcc] sm:$0xf]
  %v93 = vld [vmem:[%s1 + $0xd0] sm:$0xf]
  %v94 = vld [vmem:[%s1 + $0xd4] sm:$0xf]
  %v95 = vld [vmem:[%s1 + $0xd8] sm:$0xf]
  %v96 = vld [vmem:[%s1 + $0xdc] sm:$0xf]
  %v97 = vld [vmem:[%s1 + $0xe0] sm:$0xf]
  %v98 = vld [vmem:[%s1 + $0xe4] sm:$0xf]
  %v99 = vld [vmem:[%s1 + $0xe8] sm:$0xf]
  %v100 = vld [vmem:[%s1 + $0xec] sm:$0xf]
  %v101 = vld [vmem:[%s1 + $0xf0] sm:$0xf]
  %v102 = vld [vmem:[%s1 + $0xf4] sm:$0xf]
  %v103 = vld [vmem:[%s1 + $0xf8] sm:$0xf]
  %v104 = vld [vmem:[%s1 + $0xfc] sm:$0xf]
  %v105 = vunpack.c.l.bf16 %v41
  %v106 = vunpack.c.l.bf16 %v42
  %v107 = vunpack.c.l.bf16 %v43
  %v108 = vunpack.c.l.bf16 %v44
  %v109 = vunpack.c.l.bf16 %v45
  %v110 = vunpack.c.l.bf16 %v46
  %v111 = vunpack.c.l.bf16 %v47
  %v112 = vunpack.c.l.bf16 %v48
  %v113 = vunpack.c.l.bf16 %v49
  %v114 = vunpack.c.l.bf16 %v50
  %v115 = vunpack.c.l.bf16 %v51
  %v116 = vunpack.c.l.bf16 %v52
  %v117 = vunpack.c.l.bf16 %v53
  %v118 = vunpack.c.l.bf16 %v54
  %v119 = vunpack.c.l.bf16 %v55
  %v120 = vunpack.c.l.bf16 %v56
  %v121 = vunpack.c.l.bf16 %v57
  %v122 = vunpack.c.l.bf16 %v58
  %v123 = vunpack.c.l.bf16 %v59
  %v124 = vunpack.c.l.bf16 %v60
  %v125 = vunpack.c.l.bf16 %v61
  %v126 = vunpack.c.l.bf16 %v62
  %v127 = vunpack.c.l.bf16 %v63
  %v128 = vunpack.c.l.bf16 %v64
  %v129 = vunpack.c.l.bf16 %v65
  %v130 = vunpack.c.l.bf16 %v66
  %v131 = vunpack.c.l.bf16 %v67
  %v132 = vunpack.c.l.bf16 %v68
  %v133 = vunpack.c.l.bf16 %v69
  %v134 = vunpack.c.l.bf16 %v70
  %v135 = vunpack.c.l.bf16 %v71
  %v136 = vunpack.c.l.bf16 %v72
  %v137 = vunpack.c.l.bf16 %v73
  %v138 = vunpack.c.l.bf16 %v74
  %v139 = vunpack.c.l.bf16 %v75
  %v140 = vunpack.c.l.bf16 %v76
  %v141 = vunpack.c.l.bf16 %v77
  %v142 = vunpack.c.l.bf16 %v78
  %v143 = vunpack.c.l.bf16 %v79
  %v144 = vunpack.c.l.bf16 %v80
  %v145 = vunpack.c.l.bf16 %v81
  %v146 = vunpack.c.l.bf16 %v82
  %v147 = vunpack.c.l.bf16 %v83
  %v148 = vunpack.c.l.bf16 %v84
  %v149 = vunpack.c.l.bf16 %v85
  %v150 = vunpack.c.l.bf16 %v86
  %v151 = vunpack.c.l.bf16 %v87
  %v152 = vunpack.c.l.bf16 %v88
  %v153 = vunpack.c.l.bf16 %v89
  %v154 = vunpack.c.l.bf16 %v90
  %v155 = vunpack.c.l.bf16 %v91
  %v156 = vunpack.c.l.bf16 %v92
  %v157 = vunpack.c.l.bf16 %v93
  %v158 = vunpack.c.l.bf16 %v94
  %v159 = vunpack.c.l.bf16 %v95
  %v160 = vunpack.c.l.bf16 %v96
  %v161 = vunpack.c.l.bf16 %v97
  %v162 = vunpack.c.l.bf16 %v98
  %v163 = vunpack.c.l.bf16 %v99
  %v164 = vunpack.c.l.bf16 %v100
  %v165 = vunpack.c.l.bf16 %v101
  %v166 = vunpack.c.l.bf16 %v102
  %v167 = vunpack.c.l.bf16 %v103
  %v168 = vunpack.c.l.bf16 %v104
  %v169 = vstv %s31
  %v170 = vmul.f32 %v105, %v169
  %v171 = vmul.f32 %v106, %v169
  %v172 = vmul.f32 %v107, %v169
  %v173 = vmul.f32 %v108, %v169
  %v174 = vmul.f32 %v109, %v169
  %v175 = vmul.f32 %v110, %v169
  %v176 = vmul.f32 %v111, %v169
  %v177 = vmul.f32 %v112, %v169
  %v178 = vmul.f32 %v113, %v169
  %v179 = vmul.f32 %v114, %v169
  %v180 = vmul.f32 %v115, %v169
  %v181 = vmul.f32 %v116, %v169
  %v182 = vmul.f32 %v117, %v169
  %v183 = vmul.f32 %v118, %v169
  %v184 = vmul.f32 %v119, %v169
  %v185 = vmul.f32 %v120, %v169
  %v186 = vmul.f32 %v121, %v169
  %v187 = vmul.f32 %v122, %v169
  %v188 = vmul.f32 %v123, %v169
  %v189 = vmul.f32 %v124, %v169
  %v190 = vmul.f32 %v125, %v169
  %v191 = vmul.f32 %v126, %v169
  %v192 = vmul.f32 %v127, %v169
  %v193 = vmul.f32 %v128, %v169
  %v194 = vmul.f32 %v129, %v169
  %v195 = vmul.f32 %v130, %v169
  %v196 = vmul.f32 %v131, %v169
  %v197 = vmul.f32 %v132, %v169
  %v198 = vmul.f32 %v133, %v169
  %v199 = vmul.f32 %v134, %v169
  %v200 = vmul.f32 %v135, %v169
  %v201 = vmul.f32 %v136, %v169
  %v202 = vmul.f32 %v137, %v169
  %v203 = vmul.f32 %v138, %v169
  %v204 = vmul.f32 %v139, %v169
  %v205 = vmul.f32 %v140, %v169
  %v206 = vmul.f32 %v141, %v169
  %v207 = vmul.f32 %v142, %v169
  %v208 = vmul.f32 %v143, %v169
  %v209 = vmul.f32 %v144, %v169
  %v210 = vmul.f32 %v145, %v169
  %v211 = vmul.f32 %v146, %v169
  %v212 = vmul.f32 %v147, %v169
  %v213 = vmul.f32 %v148, %v169
  %v214 = vmul.f32 %v149, %v169
  %v215 = vmul.f32 %v150, %v169
  %v216 = vmul.f32 %v151, %v169
  %v217 = vmul.f32 %v152, %v169
  %v218 = vmul.f32 %v153, %v169
  %v219 = vmul.f32 %v154, %v169
  %v220 = vmul.f32 %v155, %v169
  %v221 = vmul.f32 %v156, %v169
  %v222 = vmul.f32 %v157, %v169
  %v223 = vmul.f32 %v158, %v169
  %v224 = vmul.f32 %v159, %v169
  %v225 = vmul.f32 %v160, %v169
  %v226 = vmul.f32 %v161, %v169
  %v227 = vmul.f32 %v162, %v169
  %v228 = vmul.f32 %v163, %v169
  %v229 = vmul.f32 %v164, %v169
  %v230 = vmul.f32 %v165, %v169
  %v231 = vmul.f32 %v166, %v169
  %v232 = vmul.f32 %v167, %v169
  %v233 = vmul.f32 %v168, %v169
  %v234 = vround.ne.pseudo %v170
  %v235 = vround.ne.pseudo %v171
  %v236 = vround.ne.pseudo %v172
  %v237 = vround.ne.pseudo %v173
  %v238 = vround.ne.pseudo %v174
  %v239 = vround.ne.pseudo %v175
  %v240 = vround.ne.pseudo %v176
  %v241 = vround.ne.pseudo %v177
  %v242 = vround.ne.pseudo %v178
  %v243 = vround.ne.pseudo %v179
  %v244 = vround.ne.pseudo %v180
  %v245 = vround.ne.pseudo %v181
  %v246 = vround.ne.pseudo %v182
  %v247 = vround.ne.pseudo %v183
  %v248 = vround.ne.pseudo %v184
  %v249 = vround.ne.pseudo %v185
  %v250 = vround.ne.pseudo %v186
  %v251 = vround.ne.pseudo %v187
  %v252 = vround.ne.pseudo %v188
  %v253 = vround.ne.pseudo %v189
  %v254 = vround.ne.pseudo %v190
  %v255 = vround.ne.pseudo %v191
  %v256 = vround.ne.pseudo %v192
  %v257 = vround.ne.pseudo %v193
  %v258 = vround.ne.pseudo %v194
  %v259 = vround.ne.pseudo %v195
  %v260 = vround.ne.pseudo %v196
  %v261 = vround.ne.pseudo %v197
  %v262 = vround.ne.pseudo %v198
  %v263 = vround.ne.pseudo %v199
  %v264 = vround.ne.pseudo %v200
  %v265 = vround.ne.pseudo %v201
  %v266 = vround.ne.pseudo %v202
  %v267 = vround.ne.pseudo %v203
  %v268 = vround.ne.pseudo %v204
  %v269 = vround.ne.pseudo %v205
  %v270 = vround.ne.pseudo %v206
  %v271 = vround.ne.pseudo %v207
  %v272 = vround.ne.pseudo %v208
  %v273 = vround.ne.pseudo %v209
  %v274 = vround.ne.pseudo %v210
  %v275 = vround.ne.pseudo %v211
  %v276 = vround.ne.pseudo %v212
  %v277 = vround.ne.pseudo %v213
  %v278 = vround.ne.pseudo %v214
  %v279 = vround.ne.pseudo %v215
  %v280 = vround.ne.pseudo %v216
  %v281 = vround.ne.pseudo %v217
  %v282 = vround.ne.pseudo %v218
  %v283 = vround.ne.pseudo %v219
  %v284 = vround.ne.pseudo %v220
  %v285 = vround.ne.pseudo %v221
  %v286 = vround.ne.pseudo %v222
  %v287 = vround.ne.pseudo %v223
  %v288 = vround.ne.pseudo %v224
  %v289 = vround.ne.pseudo %v225
  %v290 = vround.ne.pseudo %v226
  %v291 = vround.ne.pseudo %v227
  %v292 = vround.ne.pseudo %v228
  %v293 = vround.ne.pseudo %v229
  %v294 = vround.ne.pseudo %v230
  %v295 = vround.ne.pseudo %v231
  %v296 = vround.ne.pseudo %v232
  %v297 = vround.ne.pseudo %v233
  %v298 = vstv %s40
  %v299 = vmul.f32 %v234, %v298
  %v300 = vmul.f32 %v235, %v298
  %v301 = vmul.f32 %v236, %v298
  %v302 = vmul.f32 %v237, %v298
  %v303 = vmul.f32 %v238, %v298
  %v304 = vmul.f32 %v239, %v298
  %v305 = vmul.f32 %v240, %v298
  %v306 = vmul.f32 %v241, %v298
  %v307 = vmul.f32 %v242, %v298
  %v308 = vmul.f32 %v243, %v298
  %v309 = vmul.f32 %v244, %v298
  %v310 = vmul.f32 %v245, %v298
  %v311 = vmul.f32 %v246, %v298
  %v312 = vmul.f32 %v247, %v298
  %v313 = vmul.f32 %v248, %v298
  %v314 = vmul.f32 %v249, %v298
  %v315 = vmul.f32 %v250, %v298
  %v316 = vmul.f32 %v251, %v298
  %v317 = vmul.f32 %v252, %v298
  %v318 = vmul.f32 %v253, %v298
  %v319 = vmul.f32 %v254, %v298
  %v320 = vmul.f32 %v255, %v298
  %v321 = vmul.f32 %v256, %v298
  %v322 = vmul.f32 %v257, %v298
  %v323 = vmul.f32 %v258, %v298
  %v324 = vmul.f32 %v259, %v298
  %v325 = vmul.f32 %v260, %v298
  %v326 = vmul.f32 %v261, %v298
  %v327 = vmul.f32 %v262, %v298
  %v328 = vmul.f32 %v263, %v298
  %v329 = vmul.f32 %v264, %v298
  %v330 = vmul.f32 %v265, %v298
  %v331 = vmul.f32 %v266, %v298
  %v332 = vmul.f32 %v267, %v298
  %v333 = vmul.f32 %v268, %v298
  %v334 = vmul.f32 %v269, %v298
  %v335 = vmul.f32 %v270, %v298
  %v336 = vmul.f32 %v271, %v298
  %v337 = vmul.f32 %v272, %v298
  %v338 = vmul.f32 %v273, %v298
  %v339 = vmul.f32 %v274, %v298
  %v340 = vmul.f32 %v275, %v298
  %v341 = vmul.f32 %v276, %v298
  %v342 = vmul.f32 %v277, %v298
  %v343 = vmul.f32 %v278, %v298
  %v344 = vmul.f32 %v279, %v298
  %v345 = vmul.f32 %v280, %v298
  %v346 = vmul.f32 %v281, %v298
  %v347 = vmul.f32 %v282, %v298
  %v348 = vmul.f32 %v283, %v298
  %v349 = vmul.f32 %v284, %v298
  %v350 = vmul.f32 %v285, %v298
  %v351 = vmul.f32 %v286, %v298
  %v352 = vmul.f32 %v287, %v298
  %v353 = vmul.f32 %v288, %v298
  %v354 = vmul.f32 %v289, %v298
  %v355 = vmul.f32 %v290, %v298
  %v356 = vmul.f32 %v291, %v298
  %v357 = vmul.f32 %v292, %v298
  %v358 = vmul.f32 %v293, %v298
  %v359 = vmul.f32 %v294, %v298
  %v360 = vmul.f32 %v295, %v298
  %v361 = vmul.f32 %v296, %v298
  %v362 = vmul.f32 %v297, %v298
  %s363 = scalar_select %p13, 1, 0
  %v364 = vstv %s363
  %vm365 = vcmp.eq.s32.totalorder %v364, 1
  %v366 = vsel %vm365, %v299, %v105
  %v367 = vsel %vm365, %v300, %v106
  %v368 = vsel %vm365, %v301, %v107
  %v369 = vsel %vm365, %v302, %v108
  %v370 = vsel %vm365, %v303, %v109
  %v371 = vsel %vm365, %v304, %v110
  %v372 = vsel %vm365, %v305, %v111
  %v373 = vsel %vm365, %v306, %v112
  %v374 = vsel %vm365, %v307, %v113
  %v375 = vsel %vm365, %v308, %v114
  %v376 = vsel %vm365, %v309, %v115
  %v377 = vsel %vm365, %v310, %v116
  %v378 = vsel %vm365, %v311, %v117
  %v379 = vsel %vm365, %v312, %v118
  %v380 = vsel %vm365, %v313, %v119
  %v381 = vsel %vm365, %v314, %v120
  %v382 = vsel %vm365, %v315, %v121
  %v383 = vsel %vm365, %v316, %v122
  %v384 = vsel %vm365, %v317, %v123
  %v385 = vsel %vm365, %v318, %v124
  %v386 = vsel %vm365, %v319, %v125
  %v387 = vsel %vm365, %v320, %v126
  %v388 = vsel %vm365, %v321, %v127
  %v389 = vsel %vm365, %v322, %v128
  %v390 = vsel %vm365, %v323, %v129
  %v391 = vsel %vm365, %v324, %v130
  %v392 = vsel %vm365, %v325, %v131
  %v393 = vsel %vm365, %v326, %v132
  %v394 = vsel %vm365, %v327, %v133
  %v395 = vsel %vm365, %v328, %v134
  %v396 = vsel %vm365, %v329, %v135
  %v397 = vsel %vm365, %v330, %v136
  %v398 = vsel %vm365, %v331, %v137
  %v399 = vsel %vm365, %v332, %v138
  %v400 = vsel %vm365, %v333, %v139
  %v401 = vsel %vm365, %v334, %v140
  %v402 = vsel %vm365, %v335, %v141
  %v403 = vsel %vm365, %v336, %v142
  %v404 = vsel %vm365, %v337, %v143
  %v405 = vsel %vm365, %v338, %v144
  %v406 = vsel %vm365, %v339, %v145
  %v407 = vsel %vm365, %v340, %v146
  %v408 = vsel %vm365, %v341, %v147
  %v409 = vsel %vm365, %v342, %v148
  %v410 = vsel %vm365, %v343, %v149
  %v411 = vsel %vm365, %v344, %v150
  %v412 = vsel %vm365, %v345, %v151
  %v413 = vsel %vm365, %v346, %v152
  %v414 = vsel %vm365, %v347, %v153
  %v415 = vsel %vm365, %v348, %v154
  %v416 = vsel %vm365, %v349, %v155
  %v417 = vsel %vm365, %v350, %v156
  %v418 = vsel %vm365, %v351, %v157
  %v419 = vsel %vm365, %v352, %v158
  %v420 = vsel %vm365, %v353, %v159
  %v421 = vsel %vm365, %v354, %v160
  %v422 = vsel %vm365, %v355, %v161
  %v423 = vsel %vm365, %v356, %v162
  %v424 = vsel %vm365, %v357, %v163
  %v425 = vsel %vm365, %v358, %v164
  %v426 = vsel %vm365, %v359, %v165
  %v427 = vsel %vm365, %v360, %v166
  %v428 = vsel %vm365, %v361, %v167
  %v429 = vsel %vm365, %v362, %v168
  %430 = vst [vmem:[%s2] sm:$0xff] %v366
  %431 = vst [vmem:[%s2 + $0x8] sm:$0xff] %v367
  %432 = vst [vmem:[%s2 + $0x10] sm:$0xff] %v368
  %433 = vst [vmem:[%s2 + $0x18] sm:$0xff] %v369
  %434 = vst [vmem:[%s2 + $0x20] sm:$0xff] %v370
  %435 = vst [vmem:[%s2 + $0x28] sm:$0xff] %v371
  %436 = vst [vmem:[%s2 + $0x30] sm:$0xff] %v372
  %437 = vst [vmem:[%s2 + $0x38] sm:$0xff] %v373
  %438 = vst [vmem:[%s2 + $0x40] sm:$0xff] %v374
  %439 = vst [vmem:[%s2 + $0x48] sm:$0xff] %v375
  %440 = vst [vmem:[%s2 + $0x50] sm:$0xff] %v376
  %441 = vst [vmem:[%s2 + $0x58] sm:$0xff] %v377
  %442 = vst [vmem:[%s2 + $0x60] sm:$0xff] %v378
  %443 = vst [vmem:[%s2 + $0x68] sm:$0xff] %v379
  %444 = vst [vmem:[%s2 + $0x70] sm:$0xff] %v380
  %445 = vst [vmem:[%s2 + $0x78] sm:$0xff] %v381
  %446 = vst [vmem:[%s2 + $0x80] sm:$0xff] %v382
  %447 = vst [vmem:[%s2 + $0x88] sm:$0xff] %v383
  %448 = vst [vmem:[%s2 + $0x90] sm:$0xff] %v384
  %449 = vst [vmem:[%s2 + $0x98] sm:$0xff] %v385
  %450 = vst [vmem:[%s2 + $0xa0] sm:$0xff] %v386
  %451 = vst [vmem:[%s2 + $0xa8] sm:$0xff] %v387
  %452 = vst [vmem:[%s2 + $0xb0] sm:$0xff] %v388
  %453 = vst [vmem:[%s2 + $0xb8] sm:$0xff] %v389
  %454 = vst [vmem:[%s2 + $0xc0] sm:$0xff] %v390
  %455 = vst [vmem:[%s2 + $0xc8] sm:$0xff] %v391
  %456 = vst [vmem:[%s2 + $0xd0] sm:$0xff] %v392
  %457 = vst [vmem:[%s2 + $0xd8] sm:$0xff] %v393
  %458 = vst [vmem:[%s2 + $0xe0] sm:$0xff] %v394
  %459 = vst [vmem:[%s2 + $0xe8] sm:$0xff] %v395
  %460 = vst [vmem:[%s2 + $0xf0] sm:$0xff] %v396
  %461 = vst [vmem:[%s2 + $0xf8] sm:$0xff] %v397
  %462 = vst [vmem:[%s2 + $0x100] sm:$0xff] %v398
  %463 = vst [vmem:[%s2 + $0x108] sm:$0xff] %v399
  %464 = vst [vmem:[%s2 + $0x110] sm:$0xff] %v400
  %465 = vst [vmem:[%s2 + $0x118] sm:$0xff] %v401
  %466 = vst [vmem:[%s2 + $0x120] sm:$0xff] %v402
  %467 = vst [vmem:[%s2 + $0x128] sm:$0xff] %v403
  %468 = vst [vmem:[%s2 + $0x130] sm:$0xff] %v404
  %469 = vst [vmem:[%s2 + $0x138] sm:$0xff] %v405
  %470 = vst [vmem:[%s2 + $0x140] sm:$0xff] %v406
  %471 = vst [vmem:[%s2 + $0x148] sm:$0xff] %v407
  %472 = vst [vmem:[%s2 + $0x150] sm:$0xff] %v408
  %473 = vst [vmem:[%s2 + $0x158] sm:$0xff] %v409
  %474 = vst [vmem:[%s2 + $0x160] sm:$0xff] %v410
  %475 = vst [vmem:[%s2 + $0x168] sm:$0xff] %v411
  %476 = vst [vmem:[%s2 + $0x170] sm:$0xff] %v412
  %477 = vst [vmem:[%s2 + $0x178] sm:$0xff] %v413
  %478 = vst [vmem:[%s2 + $0x180] sm:$0xff] %v414
  %479 = vst [vmem:[%s2 + $0x188] sm:$0xff] %v415
  %480 = vst [vmem:[%s2 + $0x190] sm:$0xff] %v416
  %481 = vst [vmem:[%s2 + $0x198] sm:$0xff] %v417
  %482 = vst [vmem:[%s2 + $0x1a0] sm:$0xff] %v418
  %483 = vst [vmem:[%s2 + $0x1a8] sm:$0xff] %v419
  %484 = vst [vmem:[%s2 + $0x1b0] sm:$0xff] %v420
  %485 = vst [vmem:[%s2 + $0x1b8] sm:$0xff] %v421
  %486 = vst [vmem:[%s2 + $0x1c0] sm:$0xff] %v422
  %487 = vst [vmem:[%s2 + $0x1c8] sm:$0xff] %v423
  %488 = vst [vmem:[%s2 + $0x1d0] sm:$0xff] %v424
  %489 = vst [vmem:[%s2 + $0x1d8] sm:$0xff] %v425
  %490 = vst [vmem:[%s2 + $0x1e0] sm:$0xff] %v426
  %491 = vst [vmem:[%s2 + $0x1e8] sm:$0xff] %v427
  %492 = vst [vmem:[%s2 + $0x1f0] sm:$0xff] %v428
  %493 = vst [vmem:[%s2 + $0x1f8] sm:$0xff] %v429
  // Predicated region
  $region10: #{qnconv2d_forward.3} parent=0 // pred_check
    _
  $region11: #{qnconv2d_forward.3} parent=0 // pred_check_branch
    %495 = sbr.rel (0) target = $region13
  $region12: #{qnconv2d_forward.3} parent=0 // pred_region
    _
  $region13: #{qnconv2d_forward.3} parent=0 // pred_fallthru
    _
  // Predicated region
  $region14: #{qnconv2d_forward.3} parent=0 // pred_check
    _
  $region15: #{qnconv2d_forward.3} parent=0 // pred_check_branch
    %497 = sbr.rel (0) target = $region17
  $region16: #{qnconv2d_forward.3} parent=0 // pred_region
    _
  $region17: #{qnconv2d_forward.3} parent=0 // pred_fallthru
    _

</llo_original>
